<compile_context>
chip_gen: v5e
topology: v5e:2x2
jax: 0.10.0
libtpu: 0.0.40
codegen_flags: <defaults>
</compile_context>

<pallas_src>
import functools

import jax
import jax.numpy as jnp
from jax.experimental import pallas as pl
from jax.experimental.pallas import tpu as pltpu


def _decapitvore_kernel(x_ref, wp_ref, bp_ref, wh_ref, bh_ref,
                        shoul_ref, y_ref, acc_ref, *, inv_feat, inv_patches):
    # Grid: (batch b [parallel], patch-row tile r [arbitrary / reduction]).
    r = pl.program_id(1)

    @pl.when(r == 0)
    def _init():
        acc_ref[...] = jnp.zeros_like(acc_ref)

    # Patch embedding: [tile_p, K] bf16 x [K, E_pad] bf16 -> f32 on the MXU.
    x = x_ref[0]                                                     # [tile_p, K]
    feat = jnp.dot(x, wp_ref[...],
                   preferred_element_type=jnp.float32) + bp_ref[...]  # [tile_p, E_pad]

    # Final backbone LayerNorm per patch row (f32, single-pass variance).
    # Pad lanes (>= E) are exactly zero, and we divide by the true E, so the
    # statistics are over real features only.
    # TODO(synk): single-pass variance is less stable than two-pass at extreme
    # activation magnitudes; verify vs. the PyTorch reference at real scales.
    mu = jnp.sum(feat, axis=-1, keepdims=True) * inv_feat
    ex2 = jnp.sum(feat * feat, axis=-1, keepdims=True) * inv_feat
    var = jnp.maximum(ex2 - mu * mu, 0.0)
    feat = (feat - mu) * jax.lax.rsqrt(var + 1e-5)

    # Running per-batch sum over patch rows (mean pool finalized at last step).
    acc_ref[...] += jnp.sum(feat, axis=0, keepdims=True)             # [1, E_pad]

    @pl.when(r == pl.num_programs(1) - 1)
    def _finalize():
        shoul = acc_ref[...] * inv_patches                           # [1, E_pad] f32
        shoul_ref[0] = shoul
        # Decapitated heads: Linear(E -> NC), bf16 inputs / f32 accumulation.
        # Pad rows of wh are zero, so garbage pad lanes of shoul contribute 0.
        y = jnp.dot(shoul.astype(jnp.bfloat16), wh_ref[...],
                    preferred_element_type=jnp.float32) + bh_ref[...]  # [1, NC_pad]
        y_ref[0] = y


def _round_up(v, m):
    return (v + m - 1) // m * m


def _pick_tile(p, want):
    cands = [d for d in range(8, min(want, p) + 1, 8) if p % d == 0]
    return max(cands) if cands else p


def decapitvore_forward(x, w_patch, b_patch, w_head, b_head,
                        patch=(2, 4, 4), tile_p=512):
    """x: [B, C, T, H, W] float32 video. Returns (shoul [B, E], y_raw [B, NC])."""
    B, C, T, H, W = x.shape
    pt, ph, pw = patch
    K = C * pt * ph * pw
    P = (T // pt) * (H // ph) * (W // pw)
    E = w_patch.shape[1]
    NC = w_head.shape[1]
    E_pad = _round_up(E, 128)
    NC_pad = _round_up(NC, 128)

    # Glue: patchify NCTHW -> [B, P, K] (matches conv3d weight flattening order).
    # Cast to bf16 FIRST so the materialized transpose copy is half-size.
    # TODO(synk): fold this transpose into the BlockSpec index_map / DMA at
    # production shapes instead of materializing it via XLA.
    xb = x.astype(jnp.bfloat16)
    xp = xb.reshape(B, C, T // pt, pt, H // ph, ph, W // pw, pw)
    xp = xp.transpose(0, 2, 4, 6, 1, 3, 5, 7)   # [B, T/pt, H/ph, W/pw, C, pt, ph, pw]
    xp = xp.reshape(B, P, K)

    # Lane-dense (128-padded) weights / biases; pads are exactly zero.
    wp = jnp.zeros((K, E_pad), jnp.bfloat16).at[:, :E].set(w_patch.astype(jnp.bfloat16))
    bp = jnp.zeros((1, E_pad), jnp.float32).at[0, :E].set(b_patch.astype(jnp.float32))
    wh = jnp.zeros((E_pad, NC_pad), jnp.bfloat16).at[:E, :NC].set(w_head.astype(jnp.bfloat16))
    bh = jnp.zeros((1, NC_pad), jnp.float32).at[0, :NC].set(b_head.astype(jnp.float32))

    tile_p = _pick_tile(P, tile_p)
    n_row_tiles = P // tile_p
    grid = (B, n_row_tiles)

    # Scoped VMEM sized to ~2x the working set (double-buffered x tile + f32 feat
    # tile + resident weights), clamped so it fits every generation (v7x: 64 MiB).
    x_tile_b = 2 * tile_p * K * 2
    feat_b = 2 * tile_p * E_pad * 4
    wts_b = K * E_pad * 2 + E_pad * NC_pad * 2 + (E_pad + NC_pad) * 4
    outs_b = 4 * (E_pad + NC_pad) * 4
    vmem_limit = int(min(max(2 * (x_tile_b + feat_b + wts_b + outs_b) + (2 << 20),
                             8 << 20), 48 << 20))

    kernel = functools.partial(_decapitvore_kernel,
                               inv_feat=1.0 / float(E),
                               inv_patches=1.0 / float(P))

    shoul_pad, y_pad = pl.pallas_call(
        kernel,
        out_shape=(jax.ShapeDtypeStruct((B, 1, E_pad), jnp.float32),
                   jax.ShapeDtypeStruct((B, 1, NC_pad), jnp.float32)),
        grid_spec=pltpu.PrefetchScalarGridSpec(
            num_scalar_prefetch=0,
            grid=grid,
            in_specs=[
                pl.BlockSpec((1, tile_p, K), lambda b, r: (b, r, 0)),   # x row tiles
                pl.BlockSpec((K, E_pad), lambda b, r: (0, 0)),          # patch weights
                pl.BlockSpec((1, E_pad), lambda b, r: (0, 0)),          # patch bias
                pl.BlockSpec((E_pad, NC_pad), lambda b, r: (0, 0)),     # head weights
                pl.BlockSpec((1, NC_pad), lambda b, r: (0, 0)),         # head bias
            ],
            out_specs=[
                pl.BlockSpec((1, 1, E_pad), lambda b, r: (b, 0, 0)),
                pl.BlockSpec((1, 1, NC_pad), lambda b, r: (b, 0, 0)),
            ],
            scratch_shapes=[pltpu.VMEM((1, E_pad), jnp.float32)],
        ),
        compiler_params=pltpu.CompilerParams(
            dimension_semantics=("parallel", "arbitrary"),
            vmem_limit_bytes=vmem_limit,
        ),
    )(xp, wp, bp, wh, bh)

    return shoul_pad[:, 0, :E], y_pad[:, 0, :NC]


def _reference(x, w_patch, b_patch, w_head, b_head, patch):
    """Pure-JAX reference with the same bf16 casts as the kernel."""
    B, C, T, H, W = x.shape
    pt, ph, pw = patch
    K = C * pt * ph * pw
    P = (T // pt) * (H // ph) * (W // pw)
    xb = x.astype(jnp.bfloat16)
    xp = xb.reshape(B, C, T // pt, pt, H // ph, ph, W // pw, pw)
    xp = xp.transpose(0, 2, 4, 6, 1, 3, 5, 7).reshape(B, P, K).astype(jnp.float32)
    feat = jnp.einsum('bpk,ke->bpe', xp, w_patch.astype(jnp.bfloat16).astype(jnp.float32))
    feat = feat + b_patch[None, None, :]
    mu = jnp.mean(feat, axis=-1, keepdims=True)
    var = jnp.mean((feat - mu) ** 2, axis=-1, keepdims=True)
    feat = (feat - mu) / jnp.sqrt(var + 1e-5)
    shoul = jnp.mean(feat, axis=1)
    y = jnp.dot(shoul.astype(jnp.bfloat16).astype(jnp.float32),
                w_head.astype(jnp.bfloat16).astype(jnp.float32)) + b_head[None, :]
    return shoul, y


if __name__ == "__main__":
    # Small shapes consistent with the module's forward:
    #   video x: [B=2, C=3, T=8, H=16, W=16]
    #   VID_EMBED_SIZE (embedding_size) E = 32, num_classes NC = 16
    B, C, T, H, W = 2, 3, 8, 16, 16
    pt, ph, pw = 2, 4, 4
    K = C * pt * ph * pw            # 96
    E = 32                          # cfg['MODEL']['VID_EMBED_SIZE']
    NC = 16                         # heads output classes

    key = jax.random.PRNGKey(0)
    kx, kwp, kbp, kwh, kbh = jax.random.split(key, 5)

    x = jax.random.normal(kx, (B, C, T, H, W), dtype=jnp.float32)
    w_patch = jax.random.normal(kwp, (K, E), dtype=jnp.float32) * 0.02
    b_patch = jax.random.normal(kbp, (E,), dtype=jnp.float32) * 0.02
    w_head = jax.random.normal(kwh, (E, NC), dtype=jnp.float32) * 0.02
    b_head = jax.random.normal(kbh, (NC,), dtype=jnp.float32) * 0.02

    # tile_p=32 < P=64 so the multi-step row-reduction / accumulator path is
    # exercised (production default is 512-2048 rows per tile).
    shoul, y_raw = decapitvore_forward(x, w_patch, b_patch, w_head, b_head,
                                       patch=(pt, ph, pw), tile_p=32)
    jax.block_until_ready((shoul, y_raw))
    assert shoul.shape == (B, E) and y_raw.shape == (B, NC)

    shoul_ref, y_ref = _reference(x, w_patch, b_patch, w_head, b_head, (pt, ph, pw))
    assert jnp.allclose(shoul, shoul_ref, atol=2e-2, rtol=2e-2)
    assert jnp.allclose(y_raw, y_ref, atol=2e-2, rtol=2e-2)
    print("KERNEL_OK")
</pallas_src>

<mosaic_0001>
module attributes {stable_mosaic.version = 11 : i64} {
  func.func @_decapitvore_kernel(%arg0: i32, %arg1: i32, %arg2: memref<1x32x96xbf16, #tpu.memory_space<vmem>>, %arg3: memref<96x128xbf16, #tpu.memory_space<vmem>>, %arg4: memref<1x128xf32, #tpu.memory_space<vmem>>, %arg5: memref<128x128xbf16, #tpu.memory_space<vmem>>, %arg6: memref<1x128xf32, #tpu.memory_space<vmem>>, %arg7: memref<1x1x128xf32, #tpu.memory_space<vmem>>, %arg8: memref<1x1x128xf32, #tpu.memory_space<vmem>>, %arg9: memref<1x128xf32, #tpu.memory_space<vmem>>) attributes {dimension_semantics = [#tpu.dimension_semantics<parallel>, #tpu.dimension_semantics<arbitrary>], iteration_bounds = array<i64: 2, 2>, scalar_prefetch = 0 : i64, scratch_operands = 1 : i64, tpu.core_type = #tpu.core_type<tc>, window_params = [{transform_indices = @transform_0, window_bounds = array<i64: 1, 32, 96>}, {pipeline_mode = #tpu.pipeline_mode<synchronous>, transform_indices = @transform_1, window_bounds = array<i64: 96, 128>}, {pipeline_mode = #tpu.pipeline_mode<synchronous>, transform_indices = @transform_2, window_bounds = array<i64: 1, 128>}, {pipeline_mode = #tpu.pipeline_mode<synchronous>, transform_indices = @transform_3, window_bounds = array<i64: 128, 128>}, {pipeline_mode = #tpu.pipeline_mode<synchronous>, transform_indices = @transform_4, window_bounds = array<i64: 1, 128>}, {transform_indices = @transform_5, window_bounds = array<i64: 1, 1, 128>}, {transform_indices = @transform_6, window_bounds = array<i64: 1, 1, 128>}]} {
    %c0_i32 = arith.constant 0 : i32
    %0 = arith.cmpi eq, %arg1, %c0_i32 : i32
    %1 = arith.extui %0 : i1 to i32
    %c0_i32_0 = arith.constant 0 : i32
    %2 = arith.cmpi ne, %1, %c0_i32_0 : i32
    scf.if %2 {
      %cst_19 = arith.constant 0.000000e+00 : f32
      %38 = vector.broadcast %cst_19 : f32 to vector<1x128xf32>
      %c0_20 = arith.constant 0 : index
      %c0_21 = arith.constant 0 : index
      %39 = vector.load %arg9[%c0_20, %c0_21] : memref<1x128xf32, #tpu.memory_space<vmem>>, vector<1x128xf32>
      tpu.vector_store %arg9[%c0_20, %c0_21], %38 {strides = array<i32>} : memref<1x128xf32, #tpu.memory_space<vmem>>, vector<1x128xf32>,
    } else {
    }
    %c0 = arith.constant 0 : index
    %c0_1 = arith.constant 0 : index
    %c0_2 = arith.constant 0 : index
    %3 = vector.load %arg2[%c0, %c0_1, %c0_2] : memref<1x32x96xbf16, #tpu.memory_space<vmem>>, vector<1x32x96xbf16>
    %4 = vector.shape_cast %3 : vector<1x32x96xbf16> to vector<32x96xbf16>
    %c0_3 = arith.constant 0 : index
    %c0_4 = arith.constant 0 : index
    %5 = vector.load %arg3[%c0_3, %c0_4] : memref<96x128xbf16, #tpu.memory_space<vmem>>, vector<96x128xbf16>
    %cst = arith.constant dense<0.000000e+00> : vector<32x128xf32>
    %6 = tpu.matmul %4, %5, %cst {dimension_numbers = #tpu.dot_dimension_numbers<[1], [0], [0], [1], [0, 0, 1, 1], [], []>} : vector<32x96xbf16>, vector<96x128xbf16>, vector<32x128xf32> -> vector<32x128xf32>
    %c0_5 = arith.constant 0 : index
    %c0_6 = arith.constant 0 : index
    %7 = vector.load %arg4[%c0_5, %c0_6] : memref<1x128xf32, #tpu.memory_space<vmem>>, vector<1x128xf32>
    %8 = vector.broadcast %7 : vector<1x128xf32> to vector<32x128xf32>
    %9 = arith.addf %6, %8 : vector<32x128xf32>
    %cst_7 = arith.constant dense<0.000000e+00> : vector<32xf32>
    %10 = vector.multi_reduction <add>, %9, %cst_7 [1] : vector<32x128xf32> to vector<32xf32>
    %11 = vector.shape_cast %10 : vector<32xf32> to vector<32x1xf32>
    %cst_8 = arith.constant 3.125000e-02 : f32
    %12 = vector.broadcast %cst_8 : f32 to vector<32x1xf32>
    %13 = arith.mulf %11, %12 : vector<32x1xf32>
    %14 = arith.mulf %9, %9 : vector<32x128xf32>
    %cst_9 = arith.constant dense<0.000000e+00> : vector<32xf32>
    %15 = vector.multi_reduction <add>, %14, %cst_9 [1] : vector<32x128xf32> to vector<32xf32>
    %16 = vector.shape_cast %15 : vector<32xf32> to vector<32x1xf32>
    %cst_10 = arith.constant 3.125000e-02 : f32
    %17 = vector.broadcast %cst_10 : f32 to vector<32x1xf32>
    %18 = arith.mulf %16, %17 : vector<32x1xf32>
    %19 = arith.mulf %13, %13 : vector<32x1xf32>
    %20 = arith.subf %18, %19 : vector<32x1xf32>
    %cst_11 = arith.constant 0.000000e+00 : f32
    %21 = vector.broadcast %cst_11 : f32 to vector<32x1xf32>
    %22 = arith.maximumf %20, %21 : vector<32x1xf32>
    %23 = vector.broadcast %13 : vector<32x1xf32> to vector<32x128xf32>
    %24 = arith.subf %9, %23 : vector<32x128xf32>
    %cst_12 = arith.constant 9.99999974E-6 : f32
    %25 = vector.broadcast %cst_12 : f32 to vector<32x1xf32>
    %26 = arith.addf %22, %25 : vector<32x1xf32>
    %27 = math.rsqrt %26 : vector<32x1xf32>
    %28 = vector.broadcast %27 : vector<32x1xf32> to vector<32x128xf32>
    %29 = arith.mulf %24, %28 : vector<32x128xf32>
    %c0_13 = arith.constant 0 : index
    %c0_14 = arith.constant 0 : index
    %30 = vector.load %arg9[%c0_13, %c0_14] : memref<1x128xf32, #tpu.memory_space<vmem>>, vector<1x128xf32>
    %cst_15 = arith.constant dense<0.000000e+00> : vector<128xf32>
    %31 = vector.multi_reduction <add>, %29, %cst_15 [0] : vector<32x128xf32> to vector<128xf32>
    %32 = vector.shape_cast %31 : vector<128xf32> to vector<1x128xf32>
    %33 = arith.addf %30, %32 : vector<1x128xf32>
    %c0_16 = arith.constant 0 : index
    %c0_17 = arith.constant 0 : index
    %34 = vector.load %arg9[%c0_16, %c0_17] : memref<1x128xf32, #tpu.memory_space<vmem>>, vector<1x128xf32>
    tpu.vector_store %arg9[%c0_16, %c0_17], %33 {strides = array<i32>} : memref<1x128xf32, #tpu.memory_space<vmem>>, vector<1x128xf32>,
    %c1_i32 = arith.constant 1 : i32
    %35 = arith.cmpi eq, %arg1, %c1_i32 : i32
    %36 = arith.extui %35 : i1 to i32
    %c0_i32_18 = arith.constant 0 : i32
    %37 = arith.cmpi ne, %36, %c0_i32_18 : i32
    scf.if %37 {
      %c0_19 = arith.constant 0 : index
      %c0_20 = arith.constant 0 : index
      %38 = vector.load %arg9[%c0_19, %c0_20] : memref<1x128xf32, #tpu.memory_space<vmem>>, vector<1x128xf32>
      %cst_21 = arith.constant 1.562500e-02 : f32
      %39 = vector.broadcast %cst_21 : f32 to vector<1x128xf32>
      %40 = arith.mulf %38, %39 : vector<1x128xf32>
      %c0_22 = arith.constant 0 : index
      %c0_23 = arith.constant 0 : index
      %c0_24 = arith.constant 0 : index
      %41 = vector.load %arg7[%c0_22, %c0_23, %c0_24] : memref<1x1x128xf32, #tpu.memory_space<vmem>>, vector<1x1x128xf32>
      %42 = vector.shape_cast %41 : vector<1x1x128xf32> to vector<1x128xf32>
      %43 = vector.shape_cast %40 : vector<1x128xf32> to vector<1x1x128xf32>
      tpu.vector_store %arg7[%c0_22, %c0_23, %c0_24], %43 {strides = array<i32>} : memref<1x1x128xf32, #tpu.memory_space<vmem>>, vector<1x1x128xf32>,
      %44 = arith.truncf %40 : vector<1x128xf32> to vector<1x128xbf16>
      %c0_25 = arith.constant 0 : index
      %c0_26 = arith.constant 0 : index
      %45 = vector.load %arg5[%c0_25, %c0_26] : memref<128x128xbf16, #tpu.memory_space<vmem>>, vector<128x128xbf16>
      %cst_27 = arith.constant dense<0.000000e+00> : vector<1x128xf32>
      %46 = tpu.matmul %44, %45, %cst_27 {dimension_numbers = #tpu.dot_dimension_numbers<[1], [0], [0], [1], [0, 0, 1, 1], [], []>} : vector<1x128xbf16>, vector<128x128xbf16>, vector<1x128xf32> -> vector<1x128xf32>
      %c0_28 = arith.constant 0 : index
      %c0_29 = arith.constant 0 : index
      %47 = vector.load %arg6[%c0_28, %c0_29] : memref<1x128xf32, #tpu.memory_space<vmem>>, vector<1x128xf32>
      %48 = arith.addf %46, %47 : vector<1x128xf32>
      %c0_30 = arith.constant 0 : index
      %c0_31 = arith.constant 0 : index
      %c0_32 = arith.constant 0 : index
      %49 = vector.load %arg8[%c0_30, %c0_31, %c0_32] : memref<1x1x128xf32, #tpu.memory_space<vmem>>, vector<1x1x128xf32>
      %50 = vector.shape_cast %49 : vector<1x1x128xf32> to vector<1x128xf32>
      %51 = vector.shape_cast %48 : vector<1x128xf32> to vector<1x1x128xf32>
      tpu.vector_store %arg8[%c0_30, %c0_31, %c0_32], %51 {strides = array<i32>} : memref<1x1x128xf32, #tpu.memory_space<vmem>>, vector<1x1x128xf32>,
    } else {
    }
    return
  }
  func.func @transform_0(%arg0: i32, %arg1: i32) -> (i32, i32, i32) {
    %c0_i32 = arith.constant 0 : i32
    %c0_i32_0 = arith.constant 0 : i32
    return %arg0, %arg1, %c0_i32 : i32, i32, i32
  }
  func.func @transform_1(%arg0: i32, %arg1: i32) -> (i32, i32) {
    %c0_i32 = arith.constant 0 : i32
    %c0_i32_0 = arith.constant 0 : i32
    %c0_i32_1 = arith.constant 0 : i32
    return %c0_i32, %c0_i32_0 : i32, i32
  }
  func.func @transform_2(%arg0: i32, %arg1: i32) -> (i32, i32) {
    %c0_i32 = arith.constant 0 : i32
    %c0_i32_0 = arith.constant 0 : i32
    %c0_i32_1 = arith.constant 0 : i32
    return %c0_i32, %c0_i32_0 : i32, i32
  }
  func.func @transform_3(%arg0: i32, %arg1: i32) -> (i32, i32) {
    %c0_i32 = arith.constant 0 : i32
    %c0_i32_0 = arith.constant 0 : i32
    %c0_i32_1 = arith.constant 0 : i32
    return %c0_i32, %c0_i32_0 : i32, i32
  }
  func.func @transform_4(%arg0: i32, %arg1: i32) -> (i32, i32) {
    %c0_i32 = arith.constant 0 : i32
    %c0_i32_0 = arith.constant 0 : i32
    %c0_i32_1 = arith.constant 0 : i32
    return %c0_i32, %c0_i32_0 : i32, i32
  }
  func.func @transform_5(%arg0: i32, %arg1: i32) -> (i32, i32, i32) {
    %c0_i32 = arith.constant 0 : i32
    %c0_i32_0 = arith.constant 0 : i32
    %c0_i32_1 = arith.constant 0 : i32
    return %arg0, %c0_i32, %c0_i32_0 : i32, i32, i32
  }
  func.func @transform_6(%arg0: i32, %arg1: i32) -> (i32, i32, i32) {
    %c0_i32 = arith.constant 0 : i32
    %c0_i32_0 = arith.constant 0 : i32
    %c0_i32_1 = arith.constant 0 : i32
    return %arg0, %c0_i32, %c0_i32_0 : i32, i32, i32
  }
}

</mosaic_0001>

<llo_original>
// kernel: tpu_custom_call.1
$region0: #{tpu_custom_call.1}
  #allocation0 [shape = 'u32[]', space=smem, size = 0x4, offset = 0x4, fixed_abs, tag = 'smem constant byte address 0x4 - core index']
  #allocation1 [shape = 'u32[72,128]{1,0:T(1,128)}', space=vmem, size = 0x9000, scoped, tag = 'internal scratch']
  #allocation2 [shape = 'f32[1,128]{1,0:T(1,128)}', space=vmem, size = 0x200, scoped, tag = 'scratch operand']
  %s0 = inlined_call_operand.hbm [shape: bf16[2,64,96], index: 0, kind: input, shape index: {}]
  %s1 = inlined_call_operand.hbm [shape: bf16[96,128], index: 1, kind: input, shape index: {}]
  %s2 = inlined_call_operand.vmem [shape: f32[1,128], index: 2, kind: input, shape index: {}]
  %s3 = inlined_call_operand.hbm [shape: bf16[128,128], index: 3, kind: input, shape index: {}]
  %s4 = inlined_call_operand.vmem [shape: f32[1,128], index: 4, kind: input, shape index: {}]
  %s5 = inlined_call_operand.hbm [shape: f32[2,1,128], index: 5, kind: output, shape index: {0}]
  %s6 = inlined_call_operand.hbm [shape: f32[2,1,128], index: 6, kind: output, shape index: {1}]
  %7 = xla_tuple %s5, %s6
  %s8 = sld [smem:[#allocation0]]
  $region81: #{tpu_custom_call.1} parent=0
    _
  %s10 = ssub.s32 1, %s8
  %s11 = scalar_select 0, %s10, %s8
  $region1: #{tpu_custom_call.1} parent=0
    #allocation3 [shape = 'u8[16384]{0}', space=vmem, size = 0x4000, scoped, tag = 'input window, operand 0']
    #allocation4 [shape = 's32[2]{0}', space=sflag, size = 0x8, scoped, tag = 'scoped memory for tpu_custom_call.1']
    #allocation5 [shape = 's32[2]{0}', space=sflag, size = 0x8, scoped, tag = 'scoped memory for tpu_custom_call.1']
    #allocation6 [shape = 'u8[24576]{0}', space=vmem, size = 0x6000, scoped, tag = 'input window, operand 1, single buffered']
    #allocation7 [shape = 's32[1]{0}', space=sflag, size = 0x4, scoped, tag = 'scoped memory for tpu_custom_call.1']
    #allocation8 [shape = 'u8[32768]{0}', space=vmem, size = 0x8000, scoped, tag = 'input window, operand 3, single buffered']
    #allocation9 [shape = 'u8[1024]{0}', space=vmem, size = 0x400, scoped, tag = 'output window, operand 0']
    #allocation10 [shape = 'u8[1024]{0}', space=vmem, size = 0x400, scoped, tag = 'output window, operand 1']
    #allocation11 [shape = 's32[2]{0}', space=sflag, size = 0x8, scoped, tag = 'scoped memory for tpu_custom_call.1']
    %12 = vsyncpa [#allocation4], 0
    %s13 = scalar_lea.sflag [#allocation4], 1
    %14 = vsyncpa %s13, 0
    %15 = vsyncpa [#allocation7], 0
    %16 = vsyncpa [#allocation5], 0
    %s17 = scalar_lea.sflag [#allocation5], 1
    %18 = vsyncpa %s17, 0
    %19 = vsyncpa [#allocation11], 0
    %s20 = scalar_lea.sflag [#allocation11], 1
    %21 = vsyncpa %s20, 0
    loop: start=0, step=1, limit=6
    $region2: #{tpu_custom_call.1} parent=1 // loop_pre_header
      _
    $region3: #{tpu_custom_call.1} parent=1 // loop_header
      %s23 = sphi 0, %s27
      %p24 = scmp.ge.s32.totalorder %s23, 6
      %s30 = sphi 0, %s42
      %s31 = sphi 0, %s38
      %s32 = sphi 0, %s30
      %s33 = sphi 0, %s31
      %s34 = sphi 0, %s32
      %s35 = sphi 0, %s33
      %s47 = sphi 0, %s49
      %s50 = sphi 0, %s47
      %s51 = sphi 0, %s50
      %s67 = sphi 0, %s51
      %s71 = sphi 0, %s71
      %s73 = sphi 0, %s71
      %s74 = sphi 0, %s73
      %s88 = sphi 0, %s74
      %s92 = sphi 0, %s92
      %s94 = sphi 0, %s92
      %s95 = sphi 0, %s94
      %s109 = sphi 0, %s95
      %s113 = sphi 0, %s113
      %s115 = sphi 0, %s113
      %s116 = sphi 0, %s115
      %s130 = sphi 0, %s116
      %s134 = sphi 0, %s134
      %s136 = sphi 0, %s134
      %s137 = sphi 0, %s136
      %s151 = sphi 0, %s137
      %s157 = sphi 0, %s159
      %s160 = sphi 0, %s157
      %s161 = sphi 0, %s160
      %s177 = sphi 0, %s161
      %s183 = sphi 0, %s185
      %s186 = sphi 0, %s183
      %s187 = sphi 0, %s186
      %s203 = sphi 0, %s187
    $region4: #{tpu_custom_call.1} parent=1 // loop_header_branch
      %26 = sbr.rel (%p24) target = $region8
    $region5: #{tpu_custom_call.1} parent=1 // loop_body
      %s28 = ssub.s32 %s23, 1
      %s29 = ssub.s32 %s23, 2
      %s36 = sadd.s32 1, %s31
      %p37 = scmp.ge.s32.totalorder %s36, 2
      %s38 = scalar_select %p37, 0, %s36
      %s39 = sadd.s32 1, %s30
      %s40 = scalar_select %p37, %s39, %s30
      %p41 = scmp.ge.s32.totalorder %s40, 2
      %s42 = scalar_select %p41, 0, %s40
      %s43 = ssub.s32 %s30, %s42
      %s44 = ssub.s32 %s31, %s38
      %s45 = sor.u32 %s43, %s44
      %p46 = scmp.eq.s32.totalorder %s45, 0
      %s48 = sadd.s32 %s47, 1
      %s49 = scalar_select %p46, %s47, %s48
      %p52 = pneg %p46
      %p53 = scmp.eq.s32.totalorder %s23, 3
      %p54 = por %p52, %p53
      %p55 = scmp.ne.s32.totalorder %s47, %s50
      %p56 = scmp.eq.s32.totalorder %s23, 0
      %p57 = por %p55, %p56
      %p58 = scmp.ne.s32.totalorder %s47, %s50
      %p59 = scmp.eq.s32.totalorder %s28, 3
      %p60 = por %p58, %p59
      %p61 = scmp.ne.s32.totalorder %s50, %s51
      %p62 = scmp.eq.s32.totalorder %s28, 0
      %p63 = por %p61, %p62
      %p64 = scmp.ne.s32.totalorder %s50, %s51
      %p65 = scmp.eq.s32.totalorder %s29, 3
      %p66 = por %p64, %p65
      %p68 = scmp.ne.s32.totalorder %s51, %s67
      %p69 = scmp.eq.s32.totalorder %s29, 0
      %p70 = por %p68, %p69
      %s72 = sadd.s32 %s71, 1
      %p75 = scmp.eq.s32.totalorder %s23, 3
      %p76 = scmp.ne.s32.totalorder %s71, %s73
      %p77 = scmp.eq.s32.totalorder %s23, 0
      %p78 = por %p76, %p77
      %p79 = scmp.ne.s32.totalorder %s71, %s73
      %p80 = scmp.eq.s32.totalorder %s28, 3
      %p81 = por %p79, %p80
      %p82 = scmp.ne.s32.totalorder %s73, %s74
      %p83 = scmp.eq.s32.totalorder %s28, 0
      %p84 = por %p82, %p83
      %p85 = scmp.ne.s32.totalorder %s73, %s74
      %p86 = scmp.eq.s32.totalorder %s29, 3
      %p87 = por %p85, %p86
      %p89 = scmp.ne.s32.totalorder %s74, %s88
      %p90 = scmp.eq.s32.totalorder %s29, 0
      %p91 = por %p89, %p90
      %s93 = sadd.s32 %s92, 1
      %p96 = scmp.eq.s32.totalorder %s23, 3
      %p97 = scmp.ne.s32.totalorder %s92, %s94
      %p98 = scmp.eq.s32.totalorder %s23, 0
      %p99 = por %p97, %p98
      %p100 = scmp.ne.s32.totalorder %s92, %s94
      %p101 = scmp.eq.s32.totalorder %s28, 3
      %p102 = por %p100, %p101
      %p103 = scmp.ne.s32.totalorder %s94, %s95
      %p104 = scmp.eq.s32.totalorder %s28, 0
      %p105 = por %p103, %p104
      %p106 = scmp.ne.s32.totalorder %s94, %s95
      %p107 = scmp.eq.s32.totalorder %s29, 3
      %p108 = por %p106, %p107
      %p110 = scmp.ne.s32.totalorder %s95, %s109
      %p111 = scmp.eq.s32.totalorder %s29, 0
      %p112 = por %p110, %p111
      %s114 = sadd.s32 %s113, 1
      %p117 = scmp.eq.s32.totalorder %s23, 3
      %p118 = scmp.ne.s32.totalorder %s113, %s115
      %p119 = scmp.eq.s32.totalorder %s23, 0
      %p120 = por %p118, %p119
      %p121 = scmp.ne.s32.totalorder %s113, %s115
      %p122 = scmp.eq.s32.totalorder %s28, 3
      %p123 = por %p121, %p122
      %p124 = scmp.ne.s32.totalorder %s115, %s116
      %p125 = scmp.eq.s32.totalorder %s28, 0
      %p126 = por %p124, %p125
      %p127 = scmp.ne.s32.totalorder %s115, %s116
      %p128 = scmp.eq.s32.totalorder %s29, 3
      %p129 = por %p127, %p128
      %p131 = scmp.ne.s32.totalorder %s116, %s130
      %p132 = scmp.eq.s32.totalorder %s29, 0
      %p133 = por %p131, %p132
      %s135 = sadd.s32 %s134, 1
      %p138 = scmp.eq.s32.totalorder %s23, 3
      %p139 = scmp.ne.s32.totalorder %s134, %s136
      %p140 = scmp.eq.s32.totalorder %s23, 0
      %p141 = por %p139, %p140
      %p142 = scmp.ne.s32.totalorder %s134, %s136
      %p143 = scmp.eq.s32.totalorder %s28, 3
      %p144 = por %p142, %p143
      %p145 = scmp.ne.s32.totalorder %s136, %s137
      %p146 = scmp.eq.s32.totalorder %s28, 0
      %p147 = por %p145, %p146
      %p148 = scmp.ne.s32.totalorder %s136, %s137
      %p149 = scmp.eq.s32.totalorder %s29, 3
      %p150 = por %p148, %p149
      %p152 = scmp.ne.s32.totalorder %s137, %s151
      %p153 = scmp.eq.s32.totalorder %s29, 0
      %p154 = por %p152, %p153
      %s155 = ssub.s32 %s30, %s42
      %p156 = scmp.eq.s32.totalorder %s155, 0
      %s158 = sadd.s32 %s157, 1
      %s159 = scalar_select %p156, %s157, %s158
      %p162 = pneg %p156
      %p163 = scmp.eq.s32.totalorder %s23, 3
      %p164 = por %p162, %p163
      %p165 = scmp.ne.s32.totalorder %s157, %s160
      %p166 = scmp.eq.s32.totalorder %s23, 0
      %p167 = por %p165, %p166
      %p168 = scmp.ne.s32.totalorder %s157, %s160
      %p169 = scmp.eq.s32.totalorder %s28, 3
      %p170 = por %p168, %p169
      %p171 = scmp.ne.s32.totalorder %s160, %s161
      %p172 = scmp.eq.s32.totalorder %s28, 0
      %p173 = por %p171, %p172
      %p174 = scmp.ne.s32.totalorder %s160, %s161
      %p175 = scmp.eq.s32.totalorder %s29, 3
      %p176 = por %p174, %p175
      %p178 = scmp.ne.s32.totalorder %s161, %s177
      %p179 = scmp.eq.s32.totalorder %s29, 0
      %p180 = por %p178, %p179
      %s181 = ssub.s32 %s30, %s42
      %p182 = scmp.eq.s32.totalorder %s181, 0
      %s184 = sadd.s32 %s183, 1
      %s185 = scalar_select %p182, %s183, %s184
      %p188 = pneg %p182
      %p189 = scmp.eq.s32.totalorder %s23, 3
      %p190 = por %p188, %p189
      %p191 = scmp.ne.s32.totalorder %s183, %s186
      %p192 = scmp.eq.s32.totalorder %s23, 0
      %p193 = por %p191, %p192
      %p194 = scmp.ne.s32.totalorder %s183, %s186
      %p195 = scmp.eq.s32.totalorder %s28, 3
      %p196 = por %p194, %p195
      %p197 = scmp.ne.s32.totalorder %s186, %s187
      %p198 = scmp.eq.s32.totalorder %s28, 0
      %p199 = por %p197, %p198
      %p200 = scmp.ne.s32.totalorder %s186, %s187
      %p201 = scmp.eq.s32.totalorder %s29, 3
      %p202 = por %p200, %p201
      %p204 = scmp.ne.s32.totalorder %s187, %s203
      %p205 = scmp.eq.s32.totalorder %s29, 0
      %p206 = por %p204, %p205
      %p207 = scmp.le.s32.totalorder 1, %s23
      %p208 = scmp.lt.s32.totalorder %s23, 5
      %p209 = pnand %p207, %p208
      %p210 = pneg %p209
      // Predicated region
      $region9: #{tpu_custom_call.1} parent=5 // pred_check
        _
      $region10: #{tpu_custom_call.1} parent=5 // pred_check_branch
        %212 = sbr.rel (%p209) target = $region12
      $region11: #{tpu_custom_call.1} parent=5 // pred_region
        %s213 = ssub.s32 %s23, 1
        // Predicated region
        $region13: #{tpu_custom_call.1} parent=11 // pred_check
          %p214 = pneg %p84
        $region14: #{tpu_custom_call.1} parent=11 // pred_check_branch
          %216 = sbr.rel (%p214) target = $region16
        $region15: #{tpu_custom_call.1} parent=11 // pred_region
          %218 = vsyncadd [#allocation7], 0
          %s219 = sshll.u32 %s1, 4
          %s220 = int_to_ptr.hbm [resolvable:$true] %s219
          %s221 = sshll.u32 [#allocation6], 4
          %s222 = int_to_ptr.vmem [resolvable:$true] %s221
          %227 = dma.hbm_to_vmem [thread:$0]  %s220, 768, %s222, [#allocation7], 64, 64, 4
        $region16: #{tpu_custom_call.1} parent=11 // pred_fallthru
          _
        // Predicated region
        $region17: #{tpu_custom_call.1} parent=11 // pred_check
          %p228 = pneg %p105
        $region18: #{tpu_custom_call.1} parent=11 // pred_check_branch
          %230 = sbr.rel (%p228) target = $region20
        $region19: #{tpu_custom_call.1} parent=11 // pred_region
          _
        $region20: #{tpu_custom_call.1} parent=11 // pred_fallthru
          _
        // Predicated region
        $region21: #{tpu_custom_call.1} parent=11 // pred_check
          %p231 = pneg %p126
        $region22: #{tpu_custom_call.1} parent=11 // pred_check_branch
          %233 = sbr.rel (%p231) target = $region24
        $region23: #{tpu_custom_call.1} parent=11 // pred_region
          %235 = vsyncadd [#allocation7], 0
          %s236 = sshll.u32 %s3, 4
          %s237 = int_to_ptr.hbm [resolvable:$true] %s236
          %s238 = sshll.u32 [#allocation8], 4
          %s239 = int_to_ptr.vmem [resolvable:$true] %s238
          %244 = dma.hbm_to_vmem [thread:$0]  %s237, 1024, %s239, [#allocation7], 64, 64, 4
        $region24: #{tpu_custom_call.1} parent=11 // pred_fallthru
          _
        // Predicated region
        $region25: #{tpu_custom_call.1} parent=11 // pred_check
          %p245 = pneg %p147
        $region26: #{tpu_custom_call.1} parent=11 // pred_check_branch
          %247 = sbr.rel (%p245) target = $region28
        $region27: #{tpu_custom_call.1} parent=11 // pred_region
          _
        $region28: #{tpu_custom_call.1} parent=11 // pred_fallthru
          _
      $region12: #{tpu_custom_call.1} parent=5 // pred_fallthru
        _
      %p248 = scmp.lt.s32.totalorder %s23, 4
      // Predicated region
      $region29: #{tpu_custom_call.1} parent=5 // pred_check
        %p249 = pneg %p248
      $region30: #{tpu_custom_call.1} parent=5 // pred_check_branch
        %251 = sbr.rel (%p249) target = $region32
      $region31: #{tpu_custom_call.1} parent=5 // pred_region
        // Predicated region
        $region33: #{tpu_custom_call.1} parent=31 // pred_check
          %p252 = pneg %p57
        $region34: #{tpu_custom_call.1} parent=31 // pred_check_branch
          %254 = sbr.rel (%p252) target = $region36
        $region35: #{tpu_custom_call.1} parent=31 // pred_region
          %s255 = sand.u32 %s47, 1
          %s256 = scalar_lea.sflag [#allocation4], %s255
          %s257 = sand.u32 %s47, 1
          %s258 = smul.addr %s257, 16
          %s259 = scalar_lea.vmem [#allocation3], %s258
          %s260 = smul.u32 4, %s31
          %262 = vsyncadd %s256, 0
          %s263 = smul.addr %s30, 8
          %s264 = sadd.s32 %s260, %s263
          %s265 = smul.addr %s264, 4
          %s266 = scalar_lea.hbm %s0, %s265
          %s267 = sshll.u32 %s266, 4
          %s268 = int_to_ptr.hbm [resolvable:$true] %s267
          %s269 = sshll.u32 %s259, 4
          %s270 = int_to_ptr.vmem [resolvable:$true] %s269
          %275 = dma.hbm_to_vmem [thread:$0]  %s268, 256, %s270, %s256, 64, 64, 4
        $region36: #{tpu_custom_call.1} parent=31 // pred_fallthru
          _
      $region32: #{tpu_custom_call.1} parent=5 // pred_fallthru
        _
      %p276 = scmp.le.s32.totalorder 1, %s23
      %p277 = scmp.lt.s32.totalorder %s23, 5
      %p278 = pnand %p276, %p277
      %p279 = pneg %p278
      // Predicated region
      $region37: #{tpu_custom_call.1} parent=5 // pred_check
        _
      $region38: #{tpu_custom_call.1} parent=5 // pred_check_branch
        %281 = sbr.rel (%p278) target = $region40
      $region39: #{tpu_custom_call.1} parent=5 // pred_region
        %s282 = ssub.s32 %s23, 1
        %s283 = sand.u32 %s50, 1
        %s284 = scalar_lea.sflag [#allocation4], %s283
        %s285 = sand.u32 %s50, 1
        %s286 = smul.addr %s285, 16
        %s287 = scalar_lea.vmem [#allocation3], %s286
        // Predicated region
        $region41: #{tpu_custom_call.1} parent=39 // pred_check
          %p288 = pneg %p63
        $region42: #{tpu_custom_call.1} parent=39 // pred_check_branch
          %290 = sbr.rel (%p288) target = $region44
        $region43: #{tpu_custom_call.1} parent=39 // pred_region
          %292 = dma.done %s284, 256
        $region44: #{tpu_custom_call.1} parent=39 // pred_fallthru
          _
        // Predicated region
        $region45: #{tpu_custom_call.1} parent=39 // pred_check
          %p293 = pneg %p84
        $region46: #{tpu_custom_call.1} parent=39 // pred_check_branch
          %295 = sbr.rel (%p293) target = $region48
        $region47: #{tpu_custom_call.1} parent=39 // pred_region
          %297 = dma.done [#allocation7], 768
        $region48: #{tpu_custom_call.1} parent=39 // pred_fallthru
          _
        // Predicated region
        $region49: #{tpu_custom_call.1} parent=39 // pred_check
          %p298 = pneg %p126
        $region50: #{tpu_custom_call.1} parent=39 // pred_check_branch
          %300 = sbr.rel (%p298) target = $region52
        $region51: #{tpu_custom_call.1} parent=39 // pred_region
          %302 = dma.done [#allocation7], 1024
        $region52: #{tpu_custom_call.1} parent=39 // pred_fallthru
          _
        %s303 = sand.u32 %s50, 1
        %s304 = scalar_lea.sflag [#allocation4], %s303
        %s305 = sand.u32 %s50, 1
        %s306 = smul.addr %s305, 16
        %s307 = scalar_lea.vmem [#allocation3], %s306
        %p308 = pneg %p63
        %p309 = pneg %p60
        %p310 = pneg %p84
        %p311 = pneg %p81
        %p312 = pneg %p105
        %p313 = pneg %p102
        %p314 = pneg %p126
        %p315 = pneg %p123
        %p316 = pneg %p147
        %p317 = pneg %p144
        %p318 = pneg %p173
        %p319 = pneg %p170
        %s320 = sand.u32 %s160, 1
        %s321 = scalar_lea.sflag [#allocation5], %s320
        %s322 = sand.u32 %s160, 1
        %s323 = scalar_lea.vmem [#allocation9], %s322
        %p324 = pneg %p199
        %p325 = pneg %p196
        %s326 = sand.u32 %s186, 1
        %s327 = scalar_lea.sflag [#allocation11], %s326
        %s328 = sand.u32 %s186, 1
        %s329 = scalar_lea.vmem [#allocation10], %s328
        %s330 = smul.u32 4, %s33
        %p332 = scmp.eq.s32.totalorder %s33, 0
        // Predicated region
        $region53: #{tpu_custom_call.1} parent=39 // pred_check
          %p333 = pneg %p332
        $region54: #{tpu_custom_call.1} parent=39 // pred_check_branch
          %335 = sbr.rel (%p333) target = $region56
        $region55: #{tpu_custom_call.1} parent=39 // pred_region
          %336 = vst [vmem:[#allocation2] sm:$0x1] 0.0
        $region56: #{tpu_custom_call.1} parent=39 // pred_fallthru
          _
        %v337 = vld [vmem:[%s287] sm:$0xf]
        %v338 = vld [vmem:[%s287 + $0x4] sm:$0xf]
        %v339 = vld [vmem:[%s287 + $0x8] sm:$0xf]
        %v340 = vld [vmem:[%s287 + $0xc] sm:$0xf]
        %v341 = vld [vmem:[#allocation6] sm:$0xf]
        %v342 = vld [vmem:[#allocation6 + $0x4] sm:$0xf]
        %v343 = vld [vmem:[#allocation6 + $0x8] sm:$0xf]
        %v344 = vld [vmem:[#allocation6 + $0xc] sm:$0xf]
        %v345 = vld [vmem:[#allocation6 + $0x10] sm:$0xf]
        %v346 = vld [vmem:[#allocation6 + $0x14] sm:$0xf]
        %v347 = vld [vmem:[#allocation6 + $0x18] sm:$0xf]
        %v348 = vld [vmem:[#allocation6 + $0x1c] sm:$0xf]
        %v349 = vld [vmem:[#allocation6 + $0x20] sm:$0xf]
        %v350 = vld [vmem:[#allocation6 + $0x24] sm:$0xf]
        %v351 = vld [vmem:[#allocation6 + $0x28] sm:$0xf]
        %v352 = vld [vmem:[#allocation6 + $0x2c] sm:$0xf]
        %v353 = vld [vmem:[%s2] sm:$0x1]
        %v355 = vperm.slane %v353, 0
        %v361 = vunpack.c.l.b16 %v337
        %v362 = vunpack.c.l.b16 %v338
        %v363 = vunpack.c.l.b16 %v339
        %v364 = vunpack.c.l.b16 %v340
        %v365 = vpack.c.b16 %v362, %v361
        %v366 = vpack.c.b16 %v364, %v363
        %v379 = vunpack.c.l.b16 %v341
        %v380 = vunpack.c.l.b16 %v342
        %v381 = vunpack.c.l.b16 %v343
        %v382 = vunpack.c.l.b16 %v344
        %v383 = vunpack.c.l.b16 %v345
        %v384 = vunpack.c.l.b16 %v346
        %v385 = vunpack.c.l.b16 %v347
        %v386 = vunpack.c.l.b16 %v348
        %v387 = vunpack.c.l.b16 %v349
        %v388 = vunpack.c.l.b16 %v350
        %v389 = vunpack.c.l.b16 %v351
        %v390 = vunpack.c.l.b16 %v352
        %v391 = vpack.c.b16 %v380, %v379
        %v392 = vpack.c.b16 %v382, %v381
        %v393 = vpack.c.b16 %v384, %v383
        %v394 = vpack.c.b16 %v386, %v385
        %v395 = vpack.c.b16 %v388, %v387
        %v396 = vpack.c.b16 %v390, %v389
        %vm403 = vcmask 785408
        %v405 = vsel %vm403, %v365, 0
        %v408 = vsel %vm403, %v366, 0
        %410 = vmatpush.bf16.msra.mxu0 0
        %411 = vmatpush.bf16.msra.mxu0 0
        %412 = vmatpush.bf16.msra.mxu0 %v396
        %413 = vmatpush.bf16.msra.mxu0 %v395
        %414 = vmatpush.bf16.msra.mxu0 %v394
        %415 = vmatpush.bf16.msra.mxu0 %v393
        %416 = vmatpush.bf16.msra.mxu0 %v392
        %417 = vmatpush.bf16.msra.mxu0 %v391
        %418 = vmatmul.bf16.gmra.mxu0 %v405
        %v419 = vpop.f32.mrf.mxu0
        %v420 = vadd.f32 %v355, %v419
        %v421 = vpop.f32.mrf.mxu0
        %v422 = vadd.f32 %v355, %v421
        %423 = vmatmul.bf16.gmra.mxu0 %v408
        %v424 = vpop.f32.mrf.mxu0
        %v425 = vadd.f32 %v355, %v424
        %v426 = vpop.f32.mrf.mxu0
        %v427 = vadd.f32 %v355, %v426
        %428 = vdwg.mxu0
        %429 = vadd.xlane.f32.xlu0 %v420
        %v430 = vpop.xlane.xlu0 %429
        %431 = vadd.xlane.f32.xlu0 %v422
        %v432 = vpop.xlane.xlu0 %431
        %433 = vadd.xlane.f32.xlu0 %v425
        %v434 = vpop.xlane.xlu0 %433
        %435 = vadd.xlane.f32.xlu0 %v427
        %v436 = vpop.xlane.xlu0 %435
        %v437 = vmul.f32 %v430, 0.03125
        %v438 = vmul.f32 %v432, 0.03125
        %v439 = vmul.f32 %v434, 0.03125
        %v440 = vmul.f32 %v436, 0.03125
        %v441 = vmul.f32 %v420, %v420
        %v442 = vmul.f32 %v422, %v422
        %v443 = vmul.f32 %v425, %v425
        %v444 = vmul.f32 %v427, %v427
        %445 = vadd.xlane.f32.xlu0 %v441
        %v446 = vpop.xlane.xlu0 %445
        %447 = vadd.xlane.f32.xlu0 %v442
        %v448 = vpop.xlane.xlu0 %447
        %449 = vadd.xlane.f32.xlu0 %v443
        %v450 = vpop.xlane.xlu0 %449
        %451 = vadd.xlane.f32.xlu0 %v444
        %v452 = vpop.xlane.xlu0 %451
        %v453 = vmul.f32 %v446, 0.03125
        %v454 = vmul.f32 %v448, 0.03125
        %v455 = vmul.f32 %v450, 0.03125
        %v456 = vmul.f32 %v452, 0.03125
        %v457 = vmul.f32 %v437, %v437
        %v458 = vmul.f32 %v438, %v438
        %v459 = vmul.f32 %v439, %v439
        %v460 = vmul.f32 %v440, %v440
        %v461 = vsub.f32 %v453, %v457
        %v462 = vsub.f32 %v454, %v458
        %v463 = vsub.f32 %v455, %v459
        %v464 = vsub.f32 %v456, %v460
        %v465 = vmax.f32 %v461, 0.0
        %v466 = vmax.f32 %v462, 0.0
        %v467 = vmax.f32 %v463, 0.0
        %v468 = vmax.f32 %v464, 0.0
        %v469 = vsub.f32 %v420, %v437
        %v470 = vsub.f32 %v422, %v438
        %v471 = vsub.f32 %v425, %v439
        %v472 = vsub.f32 %v427, %v440
        %v473 = vadd.f32 %v465, 1e-05
        %v474 = vadd.f32 %v466, 1e-05
        %v475 = vadd.f32 %v467, 1e-05
        %v476 = vadd.f32 %v468, 1e-05
        %v477 = vrsqrt.pop %v473
        %v478 = vmul.f32 %v477, %v473
        %v479 = vmul.f32 %v478, %v477
        %v480 = vmul.f32 0.5, %v479
        %v481 = vsub.f32 1.5, %v480
        %v482 = vmul.f32 %v477, %v481
        %vm483 = vweird.f32 %v473
        %vm484 = vweird.f32 %v477
        %vm485 = vmor %vm483, %vm484
        %v486 = vsel %vm485, %v477, %v482
        %v487 = vrsqrt.pop %v474
        %v488 = vmul.f32 %v487, %v474
        %v489 = vmul.f32 %v488, %v487
        %v490 = vmul.f32 0.5, %v489
        %v491 = vsub.f32 1.5, %v490
        %v492 = vmul.f32 %v487, %v491
        %vm493 = vweird.f32 %v474
        %vm494 = vweird.f32 %v487
        %vm495 = vmor %vm493, %vm494
        %v496 = vsel %vm495, %v487, %v492
        %v497 = vrsqrt.pop %v475
        %v498 = vmul.f32 %v497, %v475
        %v499 = vmul.f32 %v498, %v497
        %v500 = vmul.f32 0.5, %v499
        %v501 = vsub.f32 1.5, %v500
        %v502 = vmul.f32 %v497, %v501
        %vm503 = vweird.f32 %v475
        %vm504 = vweird.f32 %v497
        %vm505 = vmor %vm503, %vm504
        %v506 = vsel %vm505, %v497, %v502
        %v507 = vrsqrt.pop %v476
        %v508 = vmul.f32 %v507, %v476
        %v509 = vmul.f32 %v508, %v507
        %v510 = vmul.f32 0.5, %v509
        %v511 = vsub.f32 1.5, %v510
        %v512 = vmul.f32 %v507, %v511
        %vm513 = vweird.f32 %v476
        %vm514 = vweird.f32 %v507
        %vm515 = vmor %vm513, %vm514
        %v516 = vsel %vm515, %v507, %v512
        %v517 = vmul.f32 %v469, %v486
        %v518 = vmul.f32 %v470, %v496
        %v519 = vmul.f32 %v471, %v506
        %v520 = vmul.f32 %v472, %v516
        %v521 = vld [vmem:[#allocation2] sm:$0x1]
        %v522 = vadd.f32 %v517, %v518
        %v523 = vadd.f32 %v522, %v519
        %v524 = vadd.f32 %v523, %v520
        %v525 = vrot.slane %v524, 4
        %v526 = vadd.f32 %v524, %v525
        %v527 = vrot.slane %v526, 2
        %v528 = vadd.f32 %v526, %v527
        %v529 = vrot.slane %v528, 1
        %v530 = vadd.f32 %v528, %v529
        %v531 = vadd.f32 %v521, %v530
        %532 = vst [vmem:[#allocation2] sm:$0x1] %v531
        %p533 = scmp.eq.s32.totalorder %s33, 1
        // Predicated region
        $region57: #{tpu_custom_call.1} parent=39 // pred_check
          %p534 = pneg %p533
        $region58: #{tpu_custom_call.1} parent=39 // pred_check_branch
          %536 = sbr.rel (%p534) target = $region60
        $region59: #{tpu_custom_call.1} parent=39 // pred_region
          %v537 = vld [vmem:[#allocation2] sm:$0x1]
          %v538 = vmul.f32 %v537, 0.015625
          %539 = vst [vmem:[%s323] sm:$0x1] %v538
          %v540 = vpack.c.bf16 %v538, %v538
          %v541 = vld [vmem:[#allocation8] sm:$0xf]
          %v542 = vld [vmem:[#allocation8 + $0x4] sm:$0xf]
          %v543 = vld [vmem:[#allocation8 + $0x8] sm:$0xf]
          %v544 = vld [vmem:[#allocation8 + $0xc] sm:$0xf]
          %v545 = vld [vmem:[#allocation8 + $0x10] sm:$0xf]
          %v546 = vld [vmem:[#allocation8 + $0x14] sm:$0xf]
          %v547 = vld [vmem:[#allocation8 + $0x18] sm:$0xf]
          %v548 = vld [vmem:[#allocation8 + $0x1c] sm:$0xf]
          %v549 = vld [vmem:[#allocation8 + $0x20] sm:$0xf]
          %v550 = vld [vmem:[#allocation8 + $0x24] sm:$0xf]
          %v551 = vld [vmem:[#allocation8 + $0x28] sm:$0xf]
          %v552 = vld [vmem:[#allocation8 + $0x2c] sm:$0xf]
          %v553 = vld [vmem:[#allocation8 + $0x30] sm:$0xf]
          %v554 = vld [vmem:[#allocation8 + $0x34] sm:$0xf]
          %v555 = vld [vmem:[#allocation8 + $0x38] sm:$0xf]
          %v556 = vld [vmem:[#allocation8 + $0x3c] sm:$0xf]
          %v557 = vld [vmem:[%s4] sm:$0x1]
          %v574 = vunpack.c.l.b16 %v541
          %v575 = vunpack.c.l.b16 %v542
          %v576 = vunpack.c.l.b16 %v543
          %v577 = vunpack.c.l.b16 %v544
          %v578 = vunpack.c.l.b16 %v545
          %v579 = vunpack.c.l.b16 %v546
          %v580 = vunpack.c.l.b16 %v547
          %v581 = vunpack.c.l.b16 %v548
          %v582 = vunpack.c.l.b16 %v549
          %v583 = vunpack.c.l.b16 %v550
          %v584 = vunpack.c.l.b16 %v551
          %v585 = vunpack.c.l.b16 %v552
          %v586 = vunpack.c.l.b16 %v553
          %v587 = vunpack.c.l.b16 %v554
          %v588 = vunpack.c.l.b16 %v555
          %v589 = vunpack.c.l.b16 %v556
          %v590 = vpack.c.b16 %v575, %v574
          %v591 = vpack.c.b16 %v577, %v576
          %v592 = vpack.c.b16 %v579, %v578
          %v593 = vpack.c.b16 %v581, %v580
          %v594 = vpack.c.b16 %v583, %v582
          %v595 = vpack.c.b16 %v585, %v584
          %v596 = vpack.c.b16 %v587, %v586
          %v597 = vpack.c.b16 %v589, %v588
          %606 = vmatpush.bf16.msra.mxu0 %v597
          %607 = vmatpush.bf16.msra.mxu0 %v596
          %608 = vmatpush.bf16.msra.mxu0 %v595
          %609 = vmatpush.bf16.msra.mxu0 %v594
          %610 = vmatpush.bf16.msra.mxu0 %v593
          %611 = vmatpush.bf16.msra.mxu0 %v592
          %612 = vmatpush.bf16.msra.mxu0 %v591
          %613 = vmatpush.bf16.msra.mxu0 %v590
          %614 = vmatmul.bf16.gmra.mxu0 %v540
          %v615 = vpop.f32.mrf.mxu0
          %v616 = vadd.f32 %v557, %v615
          %v617 = vpop.f32.mrf.mxu0
          %618 = vdwg.mxu0
          %619 = vst [vmem:[%s329] sm:$0x1] %v616
        $region60: #{tpu_custom_call.1} parent=39 // pred_fallthru
          _
        %s620 = sand.u32 %s160, 1
        %s621 = scalar_lea.sflag [#allocation5], %s620
        %s622 = sand.u32 %s160, 1
        %s623 = scalar_lea.vmem [#allocation9], %s622
        %s624 = sand.u32 %s186, 1
        %s625 = scalar_lea.sflag [#allocation11], %s624
        %s626 = sand.u32 %s186, 1
        %s627 = scalar_lea.vmem [#allocation10], %s626
        // Predicated region
        $region61: #{tpu_custom_call.1} parent=39 // pred_check
          %p628 = pneg %p170
        $region62: #{tpu_custom_call.1} parent=39 // pred_check_branch
          %630 = sbr.rel (%p628) target = $region64
        $region63: #{tpu_custom_call.1} parent=39 // pred_region
          %632 = vsyncadd %s621, 0
          %s633 = scalar_lea.hbm %s5, %s32
          %s635 = sshll.u32 %s623, 4
          %s636 = int_to_ptr.vmem [resolvable:$true] %s635
          %s637 = sshll.u32 %s633, 4
          %s638 = int_to_ptr.hbm [resolvable:$true] %s637
          %640 = dma.vmem_to_hbm [thread:$0]  %s636, 16, %s638, %s621
        $region64: #{tpu_custom_call.1} parent=39 // pred_fallthru
          _
        // Predicated region
        $region65: #{tpu_custom_call.1} parent=39 // pred_check
          %p641 = pneg %p196
        $region66: #{tpu_custom_call.1} parent=39 // pred_check_branch
          %643 = sbr.rel (%p641) target = $region68
        $region67: #{tpu_custom_call.1} parent=39 // pred_region
          %645 = vsyncadd %s625, 0
          %s646 = scalar_lea.hbm %s6, %s32
          %s648 = sshll.u32 %s627, 4
          %s649 = int_to_ptr.vmem [resolvable:$true] %s648
          %s650 = sshll.u32 %s646, 4
          %s651 = int_to_ptr.hbm [resolvable:$true] %s650
          %653 = dma.vmem_to_hbm [thread:$0]  %s649, 16, %s651, %s625
        $region68: #{tpu_custom_call.1} parent=39 // pred_fallthru
          _
      $region40: #{tpu_custom_call.1} parent=5 // pred_fallthru
        _
      %p654 = scmp.le.s32.totalorder 2, %s23
      // Predicated region
      $region69: #{tpu_custom_call.1} parent=5 // pred_check
        %p655 = pneg %p654
      $region70: #{tpu_custom_call.1} parent=5 // pred_check_branch
        %657 = sbr.rel (%p655) target = $region72
      $region71: #{tpu_custom_call.1} parent=5 // pred_region
        %s658 = ssub.s32 %s23, 2
        // Predicated region
        $region73: #{tpu_custom_call.1} parent=71 // pred_check
          %p659 = pneg %p176
        $region74: #{tpu_custom_call.1} parent=71 // pred_check_branch
          %661 = sbr.rel (%p659) target = $region76
        $region75: #{tpu_custom_call.1} parent=71 // pred_region
          %s662 = sand.u32 %s161, 1
          %s663 = scalar_lea.sflag [#allocation5], %s662
          %s664 = sand.u32 %s161, 1
          %s665 = scalar_lea.vmem [#allocation9], %s664
          %667 = dma.done %s663, 16
        $region76: #{tpu_custom_call.1} parent=71 // pred_fallthru
          _
        // Predicated region
        $region77: #{tpu_custom_call.1} parent=71 // pred_check
          %p668 = pneg %p202
        $region78: #{tpu_custom_call.1} parent=71 // pred_check_branch
          %670 = sbr.rel (%p668) target = $region80
        $region79: #{tpu_custom_call.1} parent=71 // pred_region
          %s671 = sand.u32 %s187, 1
          %s672 = scalar_lea.sflag [#allocation11], %s671
          %s673 = sand.u32 %s187, 1
          %s674 = scalar_lea.vmem [#allocation10], %s673
          %676 = dma.done %s672, 16
        $region80: #{tpu_custom_call.1} parent=71 // pred_fallthru
          _
      $region72: #{tpu_custom_call.1} parent=5 // pred_fallthru
        _
    $region6: #{tpu_custom_call.1} parent=1 // loop_footer
      %s27 = sadd.s32 1, %s23
    $region7: #{tpu_custom_call.1} parent=1 // loop_footer_branch
      %22 = sbr.rel target = $region3
    $region8: #{tpu_custom_call.1} parent=1 // loop_exit
      _
    %677 = vsyncpa [#allocation4], 1
    %s678 = scalar_lea.sflag [#allocation4], 1
    %679 = vsyncpa %s678, 1
    %680 = vsyncpa [#allocation7], 1
    %681 = vsyncpa [#allocation5], 1
    %s682 = scalar_lea.sflag [#allocation5], 1
    %683 = vsyncpa %s682, 1
    %684 = vsyncpa [#allocation11], 1
    %s685 = scalar_lea.sflag [#allocation11], 1
    %686 = vsyncpa %s685, 1

</llo_original>
